<compile_context>
chip_gen: v6e
topology: v6e:2x2x1
jax: 0.10.0
libtpu: 0.0.40
codegen_flags: <defaults>
</compile_context>

<pallas_src>
import functools

import jax
import jax.numpy as jnp
from jax import lax
from jax.experimental import pallas as pl
from jax.experimental.pallas import tpu as pltpu

n_embed = 384
head_size = 64
block_size = 256  # nominal causal-mask size; only the first T rows/cols are used


def head_kernel(x_ref, w_ref, o_ref, *, softmax_dtype):
    # x_ref: (bb, T, C) block of the input
    # w_ref: (C, 3H) fused [Wq*scale | Wk | Wv] bf16 projection weight
    # o_ref: (bb, T, H) output block
    bb, T, C = x_ref.shape
    H = o_ref.shape[-1]

    # ---- fused QKV projection: one MXU matmul with M = bb*T, N = 3H ----
    x = x_ref[...].reshape(bb * T, C).astype(jnp.bfloat16)
    kqv = jnp.dot(x, w_ref[...], preferred_element_type=jnp.float32)  # (bb*T, 3H)
    kqv = kqv.reshape(bb, T, 3 * H)

    # [Wq | Wk | Wv] order: q (heaviest consumer) is at lane offset 0; the
    # 1/sqrt(H) scale is already folded into Wq in the wrapper.
    q = kqv[:, :, 0 * H:1 * H].astype(jnp.bfloat16)
    k = kqv[:, :, 1 * H:2 * H].astype(jnp.bfloat16)
    v = kqv[:, :, 2 * H:3 * H].astype(jnp.bfloat16)

    # scores: batched contraction over the head dim (no explicit k transpose)
    s = jnp.einsum("bqd,bkd->bqk", q, k,
                   preferred_element_type=jnp.float32)          # (bb, T, T) f32

    # causal (lower-triangular) mask built at (T, T), broadcast over batch.
    # Finite -1e30 is robust and equivalent here (every causal row has at
    # least one unmasked entry).
    row = lax.broadcasted_iota(jnp.int32, (T, T), 0)
    col = lax.broadcasted_iota(jnp.int32, (T, T), 1)
    s = jnp.where(col <= row, s, jnp.float32(-1e30))

    # numerically stable softmax: row max in f32, elementwise chain in
    # softmax_dtype (bf16 on v6e/v7x, f32 on v5e), denom accumulated in f32.
    m = jnp.max(s, axis=-1, keepdims=True)
    z = (s - m).astype(softmax_dtype)
    e = jnp.exp(z)
    denom = jnp.sum(e, axis=-1, keepdims=True, dtype=jnp.float32)
    inv = pl.reciprocal(denom, approx=True)                      # EUP slot
    p = e * inv.astype(softmax_dtype)

    # TODO(synk): dropout(p=0.2) is stochastic in train mode; eval-mode
    # semantics (identity) implemented, matching model.eval().

    out = jnp.einsum("bqk,bkd->bqd", p.astype(jnp.bfloat16), v,
                     preferred_element_type=jnp.float32)          # (bb, T, H)
    # TODO(synk): single-head H=64 output is a masked (64-lane) store; the
    # lane-dense fix is multi-head fusion, out of scope for one Head.
    o_ref[...] = out.astype(o_ref.dtype)


def _tpu_kind():
    try:
        return jax.devices()[0].device_kind.lower()
    except Exception:
        return ""


def _vmem_limit_bytes():
    # ~25% headroom below the per-TC VMEM capacity; <= 48 MiB on v7x (64 MiB
    # physical), 64 MiB on v5e/v6e (128 MiB physical).
    try:
        cap = int(pltpu.get_tpu_info().vmem_capacity_bytes)
    except Exception:
        cap = 128 * 1024 * 1024
    return min(cap * 3 // 4, 64 * 1024 * 1024)


def _pick_block_b(B, T, kind):
    """Generation-aware batch block size."""
    if "v7" in kind:
        # 2 TCs share the grid via dimension_semantics=('parallel',):
        # keep >= 2 grid steps, prefer an even step count, and keep the
        # per-step tile modest for the 64 MiB/TC VMEM budget.
        max_bb = 8 if T >= 256 else 16
        cands = [bb for bb in range(1, min(B, max_bb) + 1) if B % bb == 0]
        multi = [bb for bb in cands if B // bb >= 2]
        if multi:
            even = [bb for bb in multi if (B // bb) % 2 == 0]
            return max(even) if even else max(multi)
        return max(cands)
    # v5e / v6e: single TensorCore -> extra grid steps are pure serial
    # overhead (~0.35 us each); take the largest divisor of B that fits VMEM.
    max_bb = 16
    cands = [bb for bb in range(1, min(B, max_bb) + 1) if B % bb == 0]
    return max(cands)


def head_forward(x, wk, wq, wv, *, block_b=None):
    B, T, C = x.shape
    H = wk.shape[1]
    kind = _tpu_kind()

    # bf16 VPU/EUP exists on v6e/v7x; v5e keeps the f32 softmax chain.
    softmax_dtype = jnp.bfloat16 if ("v6" in kind or "v7" in kind) else jnp.float32

    # Fused [Wq | Wk | Wv] weight; fold 1/sqrt(H) into Wq; cast to bf16 once.
    scale = jnp.asarray(H, jnp.float32) ** -0.5
    w_qkv = jnp.concatenate([wq * scale, wk, wv], axis=1).astype(jnp.bfloat16)

    if block_b is None:
        block_b = _pick_block_b(B, T, kind)
    grid = (B // block_b,)

    kernel = functools.partial(head_kernel, softmax_dtype=softmax_dtype)

    return pl.pallas_call(
        kernel,
        out_shape=jax.ShapeDtypeStruct((B, T, H), jnp.float32),
        grid_spec=pltpu.PrefetchScalarGridSpec(
            num_scalar_prefetch=0,
            grid=grid,
            in_specs=[
                pl.BlockSpec((block_b, T, C), lambda b: (b, 0, 0)),
                pl.BlockSpec((C, 3 * H), lambda b: (0, 0)),
            ],
            out_specs=pl.BlockSpec((block_b, T, H), lambda b: (b, 0, 0)),
        ),
        compiler_params=pltpu.CompilerParams(
            dimension_semantics=("parallel",),
            vmem_limit_bytes=_vmem_limit_bytes(),
        ),
    )(x, w_qkv)


def head_reference(x, wk, wq, wv):
    k = x @ wk
    q = x @ wq
    v = x @ wv
    s = (q @ jnp.swapaxes(k, -2, -1)) * (k.shape[-1] ** -0.5)
    T = x.shape[1]
    tril = jnp.tril(jnp.ones((T, T), dtype=bool))
    s = jnp.where(tril, s, -jnp.inf)
    w = jax.nn.softmax(s, axis=-1)
    return w @ v


if __name__ == "__main__":
    key = jax.random.PRNGKey(0)
    kx, kk, kq, kv, kx2 = jax.random.split(key, 5)

    # Deterministic parameter init (nn.Linear weights, stored transposed)
    w_scale = n_embed ** -0.5
    wk = jax.random.normal(kk, (n_embed, head_size), dtype=jnp.float32) * w_scale
    wq = jax.random.normal(kq, (n_embed, head_size), dtype=jnp.float32) * w_scale
    wv = jax.random.normal(kv, (n_embed, head_size), dtype=jnp.float32) * w_scale

    # Tolerance appropriate for bf16 MXU inputs + bf16 softmax chain on v6e/v7x.
    ATOL = RTOL = 5e-2

    # --- test 1: small sequence ---
    B, T = 2, 8
    x = jax.random.normal(kx, (B, T, n_embed), dtype=jnp.float32)
    out = jax.block_until_ready(head_forward(x, wk, wq, wv))
    ref = head_reference(x, wk, wq, wv)
    assert out.shape == (B, T, head_size)
    assert jnp.allclose(out, ref, atol=ATOL, rtol=RTOL)

    # --- test 2: larger sequence, batch-blocked grid ---
    B2, T2 = 4, 128
    x2 = jax.random.normal(kx2, (B2, T2, n_embed), dtype=jnp.float32)
    out2 = jax.block_until_ready(head_forward(x2, wk, wq, wv))
    ref2 = head_reference(x2, wk, wq, wv)
    assert out2.shape == (B2, T2, head_size)
    assert jnp.allclose(out2, ref2, atol=ATOL, rtol=RTOL)

    print("KERNEL_OK")
</pallas_src>

<mosaic_0001>
module attributes {stable_mosaic.version = 11 : i64} {
  func.func @head_kernel(%arg0: i32, %arg1: memref<2x8x384xf32, #tpu.memory_space<vmem>>, %arg2: memref<384x192xbf16, #tpu.memory_space<vmem>>, %arg3: memref<2x8x64xf32, #tpu.memory_space<vmem>>) attributes {dimension_semantics = [#tpu.dimension_semantics<parallel>], iteration_bounds = array<i64: 1>, scalar_prefetch = 0 : i64, scratch_operands = 0 : i64, tpu.core_type = #tpu.core_type<tc>, window_params = [{transform_indices = @transform_0, window_bounds = array<i64: 2, 8, 384>}, {pipeline_mode = #tpu.pipeline_mode<synchronous>, transform_indices = @transform_1, window_bounds = array<i64: 384, 192>}, {transform_indices = @transform_2, window_bounds = array<i64: 2, 8, 64>}]} {
    %c0 = arith.constant 0 : index
    %c0_0 = arith.constant 0 : index
    %c0_1 = arith.constant 0 : index
    %0 = vector.load %arg1[%c0, %c0_0, %c0_1] : memref<2x8x384xf32, #tpu.memory_space<vmem>>, vector<2x8x384xf32>
    %1 = vector.shape_cast %0 : vector<2x8x384xf32> to vector<16x384xf32>
    %2 = arith.truncf %1 : vector<16x384xf32> to vector<16x384xbf16>
    %c0_2 = arith.constant 0 : index
    %c0_3 = arith.constant 0 : index
    %3 = vector.load %arg2[%c0_2, %c0_3] : memref<384x192xbf16, #tpu.memory_space<vmem>>, vector<384x192xbf16>
    %cst = arith.constant dense<0.000000e+00> : vector<16x192xf32>
    %4 = tpu.matmul %2, %3, %cst {dimension_numbers = #tpu.dot_dimension_numbers<[1], [0], [0], [1], [0, 0, 1, 1], [], []>} : vector<16x384xbf16>, vector<384x192xbf16>, vector<16x192xf32> -> vector<16x192xf32>
    %5 = vector.shape_cast %4 : vector<16x192xf32> to vector<2x8x192xf32>
    %6 = vector.extract_strided_slice %5 {offsets = [0, 0, 0], sizes = [2, 8, 64], strides = [1, 1, 1]} : vector<2x8x192xf32> to vector<2x8x64xf32>
    %7 = arith.truncf %6 : vector<2x8x64xf32> to vector<2x8x64xbf16>
    %8 = vector.extract_strided_slice %5 {offsets = [0, 0, 64], sizes = [2, 8, 64], strides = [1, 1, 1]} : vector<2x8x192xf32> to vector<2x8x64xf32>
    %9 = arith.truncf %8 : vector<2x8x64xf32> to vector<2x8x64xbf16>
    %10 = vector.extract_strided_slice %5 {offsets = [0, 0, 128], sizes = [2, 8, 64], strides = [1, 1, 1]} : vector<2x8x192xf32> to vector<2x8x64xf32>
    %11 = arith.truncf %10 : vector<2x8x64xf32> to vector<2x8x64xbf16>
    "tpu.trace_start"() <{level = 10 : i32, message = "bqd,bkd->bqk"}> : () -> ()
    %cst_4 = arith.constant dense<0.000000e+00> : vector<2x8x8xf32>
    %12 = tpu.matmul %7, %9, %cst_4 {dimension_numbers = #tpu.dot_dimension_numbers<[2], [2], [1], [1], [0, 0, 0, 1, 1, 1], [0], [0]>} : vector<2x8x64xbf16>, vector<2x8x64xbf16>, vector<2x8x8xf32> -> vector<2x8x8xf32>
    "tpu.trace_stop"() : () -> ()
    %13 = tpu.iota {dimensions = array<i32: 0>} : vector<8x8xi32>
    %14 = tpu.iota {dimensions = array<i32: 1>} : vector<8x8xi32>
    %15 = arith.cmpi sle, %14, %13 : vector<8x8xi32>
    %cst_5 = arith.constant -1.000000e+30 : f32
    %16 = vector.shape_cast %15 : vector<8x8xi1> to vector<1x8x8xi1>
    %17 = vector.broadcast %16 : vector<1x8x8xi1> to vector<2x8x8xi1>
    %18 = vector.broadcast %cst_5 : f32 to vector<2x8x8xf32>
    %19 = arith.select %17, %12, %18 : vector<2x8x8xi1>, vector<2x8x8xf32>
    %cst_6 = arith.constant dense<0xFF800000> : vector<2x8xf32>
    %20 = vector.multi_reduction <maximumf>, %19, %cst_6 [2] : vector<2x8x8xf32> to vector<2x8xf32>
    %21 = vector.shape_cast %20 : vector<2x8xf32> to vector<2x8x1xf32>
    %22 = vector.broadcast %21 : vector<2x8x1xf32> to vector<2x8x8xf32>
    %23 = arith.subf %19, %22 : vector<2x8x8xf32>
    %24 = math.exp %23 : vector<2x8x8xf32>
    %cst_7 = arith.constant dense<0.000000e+00> : vector<2x8xf32>
    %25 = vector.multi_reduction <add>, %24, %cst_7 [2] : vector<2x8x8xf32> to vector<2x8xf32>
    %26 = vector.shape_cast %25 : vector<2x8xf32> to vector<2x8x1xf32>
    %27 = tpu.reciprocal %26 {approx = true} : vector<2x8x1xf32> -> vector<2x8x1xf32>
    %28 = vector.broadcast %27 : vector<2x8x1xf32> to vector<2x8x8xf32>
    %29 = arith.mulf %24, %28 : vector<2x8x8xf32>
    %30 = arith.truncf %29 : vector<2x8x8xf32> to vector<2x8x8xbf16>
    "tpu.trace_start"() <{level = 10 : i32, message = "bqk,bkd->bqd"}> : () -> ()
    %cst_8 = arith.constant dense<0.000000e+00> : vector<2x8x64xf32>
    %31 = tpu.matmul %30, %11, %cst_8 {dimension_numbers = #tpu.dot_dimension_numbers<[2], [1], [1], [2], [0, 0, 0, 1, 1, 2], [0], [0]>} : vector<2x8x8xbf16>, vector<2x8x64xbf16>, vector<2x8x64xf32> -> vector<2x8x64xf32>
    "tpu.trace_stop"() : () -> ()
    %c0_9 = arith.constant 0 : index
    %c0_10 = arith.constant 0 : index
    %c0_11 = arith.constant 0 : index
    %32 = vector.load %arg3[%c0_9, %c0_10, %c0_11] : memref<2x8x64xf32, #tpu.memory_space<vmem>>, vector<2x8x64xf32>
    tpu.vector_store %arg3[%c0_9, %c0_10, %c0_11], %31 {strides = array<i32>} : memref<2x8x64xf32, #tpu.memory_space<vmem>>, vector<2x8x64xf32>,
    return
  }
  func.func @transform_0(%arg0: i32) -> (i32, i32, i32) {
    %c0_i32 = arith.constant 0 : i32
    %c0_i32_0 = arith.constant 0 : i32
    %c0_i32_1 = arith.constant 0 : i32
    return %arg0, %c0_i32, %c0_i32_0 : i32, i32, i32
  }
  func.func @transform_1(%arg0: i32) -> (i32, i32) {
    %c0_i32 = arith.constant 0 : i32
    %c0_i32_0 = arith.constant 0 : i32
    %c0_i32_1 = arith.constant 0 : i32
    return %c0_i32, %c0_i32_0 : i32, i32
  }
  func.func @transform_2(%arg0: i32) -> (i32, i32, i32) {
    %c0_i32 = arith.constant 0 : i32
    %c0_i32_0 = arith.constant 0 : i32
    %c0_i32_1 = arith.constant 0 : i32
    return %arg0, %c0_i32, %c0_i32_0 : i32, i32, i32
  }
}

</mosaic_0001>

<llo_original>
// kernel: tpu_custom_call.1
$region0: #{tpu_custom_call.1}
  #allocation0 [shape = 'u32[]', space=smem, size = 0x4, offset = 0x4, fixed_abs, tag = 'smem constant byte address 0x4 - core index']
  #allocation1 [shape = 'u32[144,128]{1,0:T(1,128)}', space=vmem, size = 0x12000, scoped, tag = 'internal scratch']
  %s0 = inlined_call_operand.vmem [shape: f32[2,8,384], index: 0, kind: input, shape index: {}]
  %s1 = inlined_call_operand.vmem [shape: bf16[384,192], index: 1, kind: input, shape index: {}]
  %s2 = inlined_call_operand.hbm [shape: f32[2,8,64], index: 2, kind: output, shape index: {}]
  %s3 = sld [smem:[#allocation0]]
  $region18: #{tpu_custom_call.1} parent=0
    _
  %s5 = ssub.s32 1, %s3
  %s6 = scalar_select 0, %s5, %s3
  $region1: #{tpu_custom_call.1} parent=0
    #allocation2 [shape = 'u8[8192]{0}', space=vmem, size = 0x2000, scoped, tag = 'output window, operand 0, single buffered']
    #allocation3 [shape = 's32[1]{0}', space=sflag, size = 0x4, scoped, tag = 'scoped memory for tpu_custom_call.1']
    %7 = vsyncpa [#allocation3], 0
    // Predicated region
    $region2: #{tpu_custom_call.1} parent=1 // pred_check
      _
    $region3: #{tpu_custom_call.1} parent=1 // pred_check_branch
      %9 = sbr.rel (0) target = $region5
    $region4: #{tpu_custom_call.1} parent=1 // pred_region
      _
    $region5: #{tpu_custom_call.1} parent=1 // pred_fallthru
      _
    // Predicated region
    $region6: #{tpu_custom_call.1} parent=1 // pred_check
      _
    $region7: #{tpu_custom_call.1} parent=1 // pred_check_branch
      %11 = sbr.rel (0) target = $region9
    $region8: #{tpu_custom_call.1} parent=1 // pred_region
      _
    $region9: #{tpu_custom_call.1} parent=1 // pred_fallthru
      _
    %v13 = vld [vmem:[%s0] sm:$0xff]
    %v14 = vld [vmem:[%s0 + $0x8] sm:$0xff]
    %v15 = vld [vmem:[%s0 + $0x10] sm:$0xff]
    %v16 = vld [vmem:[%s0 + $0x18] sm:$0xff]
    %v17 = vld [vmem:[%s0 + $0x20] sm:$0xff]
    %v18 = vld [vmem:[%s0 + $0x28] sm:$0xff]
    %v19 = vpack.c.bf16 %v16, %v13
    %v20 = vpack.c.bf16 %v17, %v14
    %v21 = vpack.c.bf16 %v18, %v15
    %v22 = vld [vmem:[%s1] sm:$0xff]
    %v23 = vld [vmem:[%s1 + $0x8] sm:$0xff]
    %v24 = vld [vmem:[%s1 + $0x10] sm:$0xff]
    %v25 = vld [vmem:[%s1 + $0x18] sm:$0xff]
    %v26 = vld [vmem:[%s1 + $0x20] sm:$0xff]
    %v27 = vld [vmem:[%s1 + $0x28] sm:$0xff]
    %v28 = vld [vmem:[%s1 + $0x30] sm:$0xff]
    %v29 = vld [vmem:[%s1 + $0x38] sm:$0xff]
    %v30 = vld [vmem:[%s1 + $0x40] sm:$0xff]
    %v31 = vld [vmem:[%s1 + $0x48] sm:$0xff]
    %v32 = vld [vmem:[%s1 + $0x50] sm:$0xff]
    %v33 = vld [vmem:[%s1 + $0x58] sm:$0xff]
    %v34 = vld [vmem:[%s1 + $0x60] sm:$0xff]
    %v35 = vld [vmem:[%s1 + $0x68] sm:$0xff]
    %v36 = vld [vmem:[%s1 + $0x70] sm:$0xff]
    %v37 = vld [vmem:[%s1 + $0x78] sm:$0xff]
    %v38 = vld [vmem:[%s1 + $0x80] sm:$0xff]
    %v39 = vld [vmem:[%s1 + $0x88] sm:$0xff]
    %v40 = vld [vmem:[%s1 + $0x90] sm:$0xff]
    %v41 = vld [vmem:[%s1 + $0x98] sm:$0xff]
    %v42 = vld [vmem:[%s1 + $0xa0] sm:$0xff]
    %v43 = vld [vmem:[%s1 + $0xa8] sm:$0xff]
    %v44 = vld [vmem:[%s1 + $0xb0] sm:$0xff]
    %v45 = vld [vmem:[%s1 + $0xb8] sm:$0xff]
    %v46 = vld [vmem:[%s1 + $0xc0] sm:$0xff]
    %v47 = vld [vmem:[%s1 + $0xc8] sm:$0xff]
    %v48 = vld [vmem:[%s1 + $0xd0] sm:$0xff]
    %v49 = vld [vmem:[%s1 + $0xd8] sm:$0xff]
    %v50 = vld [vmem:[%s1 + $0xe0] sm:$0xff]
    %v51 = vld [vmem:[%s1 + $0xe8] sm:$0xff]
    %v52 = vld [vmem:[%s1 + $0xf0] sm:$0xff]
    %v53 = vld [vmem:[%s1 + $0xf8] sm:$0xff]
    %v54 = vld [vmem:[%s1 + $0x100] sm:$0xff]
    %v55 = vld [vmem:[%s1 + $0x108] sm:$0xff]
    %v56 = vld [vmem:[%s1 + $0x110] sm:$0xff]
    %v57 = vld [vmem:[%s1 + $0x118] sm:$0xff]
    %v58 = vld [vmem:[%s1 + $0x120] sm:$0xff]
    %v59 = vld [vmem:[%s1 + $0x128] sm:$0xff]
    %v60 = vld [vmem:[%s1 + $0x130] sm:$0xff]
    %v61 = vld [vmem:[%s1 + $0x138] sm:$0xff]
    %v62 = vld [vmem:[%s1 + $0x140] sm:$0xff]
    %v63 = vld [vmem:[%s1 + $0x148] sm:$0xff]
    %v64 = vld [vmem:[%s1 + $0x150] sm:$0xff]
    %v65 = vld [vmem:[%s1 + $0x158] sm:$0xff]
    %v66 = vld [vmem:[%s1 + $0x160] sm:$0xff]
    %v67 = vld [vmem:[%s1 + $0x168] sm:$0xff]
    %v68 = vld [vmem:[%s1 + $0x170] sm:$0xff]
    %v69 = vld [vmem:[%s1 + $0x178] sm:$0xff]
    %v118 = vunpack.c.l.b16 %v22
    %v119 = vunpack.c.h.b16 %v22
    %v120 = vunpack.c.l.b16 %v23
    %v121 = vunpack.c.h.b16 %v23
    %v122 = vunpack.c.l.b16 %v24
    %v123 = vunpack.c.h.b16 %v24
    %v124 = vunpack.c.l.b16 %v25
    %v125 = vunpack.c.h.b16 %v25
    %v126 = vunpack.c.l.b16 %v26
    %v127 = vunpack.c.h.b16 %v26
    %v128 = vunpack.c.l.b16 %v27
    %v129 = vunpack.c.h.b16 %v27
    %v130 = vunpack.c.l.b16 %v28
    %v131 = vunpack.c.h.b16 %v28
    %v132 = vunpack.c.l.b16 %v29
    %v133 = vunpack.c.h.b16 %v29
    %v134 = vunpack.c.l.b16 %v30
    %v135 = vunpack.c.h.b16 %v30
    %v136 = vunpack.c.l.b16 %v31
    %v137 = vunpack.c.h.b16 %v31
    %v138 = vunpack.c.l.b16 %v32
    %v139 = vunpack.c.h.b16 %v32
    %v140 = vunpack.c.l.b16 %v33
    %v141 = vunpack.c.h.b16 %v33
    %v142 = vunpack.c.l.b16 %v34
    %v143 = vunpack.c.h.b16 %v34
    %v144 = vunpack.c.l.b16 %v35
    %v145 = vunpack.c.h.b16 %v35
    %v146 = vunpack.c.l.b16 %v36
    %v147 = vunpack.c.h.b16 %v36
    %v148 = vunpack.c.l.b16 %v37
    %v149 = vunpack.c.h.b16 %v37
    %v150 = vunpack.c.l.b16 %v38
    %v151 = vunpack.c.h.b16 %v38
    %v152 = vunpack.c.l.b16 %v39
    %v153 = vunpack.c.h.b16 %v39
    %v154 = vunpack.c.l.b16 %v40
    %v155 = vunpack.c.h.b16 %v40
    %v156 = vunpack.c.l.b16 %v41
    %v157 = vunpack.c.h.b16 %v41
    %v158 = vunpack.c.l.b16 %v42
    %v159 = vunpack.c.h.b16 %v42
    %v160 = vunpack.c.l.b16 %v43
    %v161 = vunpack.c.h.b16 %v43
    %v162 = vunpack.c.l.b16 %v44
    %v163 = vunpack.c.h.b16 %v44
    %v164 = vunpack.c.l.b16 %v45
    %v165 = vunpack.c.h.b16 %v45
    %v166 = vunpack.c.l.b16 %v46
    %v167 = vunpack.c.h.b16 %v46
    %v168 = vunpack.c.l.b16 %v47
    %v169 = vunpack.c.h.b16 %v47
    %v170 = vunpack.c.l.b16 %v48
    %v171 = vunpack.c.h.b16 %v48
    %v172 = vunpack.c.l.b16 %v49
    %v173 = vunpack.c.h.b16 %v49
    %v174 = vunpack.c.l.b16 %v50
    %v175 = vunpack.c.h.b16 %v50
    %v176 = vunpack.c.l.b16 %v51
    %v177 = vunpack.c.h.b16 %v51
    %v178 = vunpack.c.l.b16 %v52
    %v179 = vunpack.c.h.b16 %v52
    %v180 = vunpack.c.l.b16 %v53
    %v181 = vunpack.c.h.b16 %v53
    %v182 = vunpack.c.l.b16 %v54
    %v183 = vunpack.c.h.b16 %v54
    %v184 = vunpack.c.l.b16 %v55
    %v185 = vunpack.c.h.b16 %v55
    %v186 = vunpack.c.l.b16 %v56
    %v187 = vunpack.c.h.b16 %v56
    %v188 = vunpack.c.l.b16 %v57
    %v189 = vunpack.c.h.b16 %v57
    %v190 = vunpack.c.l.b16 %v58
    %v191 = vunpack.c.h.b16 %v58
    %v192 = vunpack.c.l.b16 %v59
    %v193 = vunpack.c.h.b16 %v59
    %v194 = vunpack.c.l.b16 %v60
    %v195 = vunpack.c.h.b16 %v60
    %v196 = vunpack.c.l.b16 %v61
    %v197 = vunpack.c.h.b16 %v61
    %v198 = vunpack.c.l.b16 %v62
    %v199 = vunpack.c.h.b16 %v62
    %v200 = vunpack.c.l.b16 %v63
    %v201 = vunpack.c.h.b16 %v63
    %v202 = vunpack.c.l.b16 %v64
    %v203 = vunpack.c.h.b16 %v64
    %v204 = vunpack.c.l.b16 %v65
    %v205 = vunpack.c.h.b16 %v65
    %v206 = vunpack.c.l.b16 %v66
    %v207 = vunpack.c.h.b16 %v66
    %v208 = vunpack.c.l.b16 %v67
    %v209 = vunpack.c.h.b16 %v67
    %v210 = vunpack.c.l.b16 %v68
    %v211 = vunpack.c.h.b16 %v68
    %v212 = vunpack.c.l.b16 %v69
    %v213 = vunpack.c.h.b16 %v69
    %v214 = vpack.c.b16 %v120, %v118
    %v215 = vpack.c.b16 %v121, %v119
    %v216 = vpack.c.b16 %v124, %v122
    %v217 = vpack.c.b16 %v125, %v123
    %v218 = vpack.c.b16 %v128, %v126
    %v219 = vpack.c.b16 %v129, %v127
    %v220 = vpack.c.b16 %v132, %v130
    %v221 = vpack.c.b16 %v133, %v131
    %v222 = vpack.c.b16 %v136, %v134
    %v223 = vpack.c.b16 %v137, %v135
    %v224 = vpack.c.b16 %v140, %v138
    %v225 = vpack.c.b16 %v141, %v139
    %v226 = vpack.c.b16 %v144, %v142
    %v227 = vpack.c.b16 %v145, %v143
    %v228 = vpack.c.b16 %v148, %v146
    %v229 = vpack.c.b16 %v149, %v147
    %v230 = vpack.c.b16 %v152, %v150
    %v231 = vpack.c.b16 %v153, %v151
    %v232 = vpack.c.b16 %v156, %v154
    %v233 = vpack.c.b16 %v157, %v155
    %v234 = vpack.c.b16 %v160, %v158
    %v235 = vpack.c.b16 %v161, %v159
    %v236 = vpack.c.b16 %v164, %v162
    %v237 = vpack.c.b16 %v165, %v163
    %v238 = vpack.c.b16 %v168, %v166
    %v239 = vpack.c.b16 %v169, %v167
    %v240 = vpack.c.b16 %v172, %v170
    %v241 = vpack.c.b16 %v173, %v171
    %v242 = vpack.c.b16 %v176, %v174
    %v243 = vpack.c.b16 %v177, %v175
    %v244 = vpack.c.b16 %v180, %v178
    %v245 = vpack.c.b16 %v181, %v179
    %v246 = vpack.c.b16 %v184, %v182
    %v247 = vpack.c.b16 %v185, %v183
    %v248 = vpack.c.b16 %v188, %v186
    %v249 = vpack.c.b16 %v189, %v187
    %v250 = vpack.c.b16 %v192, %v190
    %v251 = vpack.c.b16 %v193, %v191
    %v252 = vpack.c.b16 %v196, %v194
    %v253 = vpack.c.b16 %v197, %v195
    %v254 = vpack.c.b16 %v200, %v198
    %v255 = vpack.c.b16 %v201, %v199
    %v256 = vpack.c.b16 %v204, %v202
    %v257 = vpack.c.b16 %v205, %v203
    %v258 = vpack.c.b16 %v208, %v206
    %v259 = vpack.c.b16 %v209, %v207
    %v260 = vpack.c.b16 %v212, %v210
    %v261 = vpack.c.b16 %v213, %v211
    %310 = vmatprep.subr.bf16.mxu0 %v229
    %311 = vmatpush1.bf16.msra.mxu0 %v228
    %312 = vmatprep.subr.bf16.mxu0 %v227
    %313 = vmatpush1.bf16.msra.mxu0 %v226
    %314 = vmatprep.subr.bf16.mxu0 %v225
    %315 = vmatpush1.bf16.msra.mxu0 %v224
    %316 = vmatprep.subr.bf16.mxu0 %v223
    %317 = vmatpush1.bf16.msra.mxu0 %v222
    %318 = vmatprep.subr.bf16.mxu0 %v221
    %319 = vmatpush1.bf16.msra.mxu0 %v220
    %320 = vmatprep.subr.bf16.mxu0 %v219
    %321 = vmatpush1.bf16.msra.mxu0 %v218
    %322 = vmatprep.subr.bf16.mxu0 %v217
    %323 = vmatpush1.bf16.msra.mxu0 %v216
    %324 = vmatprep.subr.bf16.mxu0 %v215
    %325 = vmatpush1.bf16.msra.mxu0 %v214
    %326 = vmatprep.subr.bf16.mxu0 %v245
    %327 = vmatpush2.bf16.msra.mxu0 %v244
    %328 = vmatprep.subr.bf16.mxu0 %v243
    %329 = vmatpush2.bf16.msra.mxu0 %v242
    %330 = vmatprep.subr.bf16.mxu0 %v241
    %331 = vmatpush2.bf16.msra.mxu0 %v240
    %332 = vmatprep.subr.bf16.mxu0 %v239
    %333 = vmatpush2.bf16.msra.mxu0 %v238
    %334 = vmatprep.subr.bf16.mxu0 %v237
    %335 = vmatpush2.bf16.msra.mxu0 %v236
    %336 = vmatprep.subr.bf16.mxu0 %v235
    %337 = vmatpush2.bf16.msra.mxu0 %v234
    %338 = vmatprep.subr.bf16.mxu0 %v233
    %339 = vmatpush2.bf16.msra.mxu0 %v232
    %340 = vmatprep.subr.bf16.mxu0 %v231
    %341 = vmatpush2.bf16.msra.mxu0 %v230
    %342 = vmatprep.mubr.bf16.mxu0 %v20
    %343 = vmatmul.mubr.bf16.gmra.mxu0 %v19
    %v344 = vpop.f32.mrf.mxu0
    %v345 = vadd.f32 0.0, %v344
    %v346 = vpop.f32.mrf.mxu0
    %v347 = vadd.f32 0.0, %v346
    %v348 = vpop.f32.mrf.mxu0
    %v349 = vadd.f32 0.0, %v348
    %v350 = vpop.f32.mrf.mxu0
    %v351 = vadd.f32 0.0, %v350
    %352 = vdwg.mxu0
    %353 = vmatprep.subr.bf16.mxu0 %v261
    %354 = vmatpush1.bf16.msra.mxu0 %v260
    %355 = vmatprep.subr.bf16.mxu0 %v259
    %356 = vmatpush1.bf16.msra.mxu0 %v258
    %357 = vmatprep.subr.bf16.mxu0 %v257
    %358 = vmatpush1.bf16.msra.mxu0 %v256
    %359 = vmatprep.subr.bf16.mxu0 %v255
    %360 = vmatpush1.bf16.msra.mxu0 %v254
    %361 = vmatprep.subr.bf16.mxu0 %v253
    %362 = vmatpush1.bf16.msra.mxu0 %v252
    %363 = vmatprep.subr.bf16.mxu0 %v251
    %364 = vmatpush1.bf16.msra.mxu0 %v250
    %365 = vmatprep.subr.bf16.mxu0 %v249
    %366 = vmatpush1.bf16.msra.mxu0 %v248
    %367 = vmatprep.subr.bf16.mxu0 %v247
    %368 = vmatpush1.bf16.msra.mxu0 %v246
    %369 = vmatprep.subr.bf16.mxu0 0
    %370 = vmatpush2.bf16.msra.mxu0 0
    %371 = vmatprep.subr.bf16.mxu0 0
    %372 = vmatpush2.bf16.msra.mxu0 0
    %373 = vmatprep.subr.bf16.mxu0 0
    %374 = vmatpush2.bf16.msra.mxu0 0
    %375 = vmatprep.subr.bf16.mxu0 0
    %376 = vmatpush2.bf16.msra.mxu0 0
    %377 = vmatprep.subr.bf16.mxu0 0
    %378 = vmatpush2.bf16.msra.mxu0 0
    %379 = vmatprep.subr.bf16.mxu0 0
    %380 = vmatpush2.bf16.msra.mxu0 0
    %381 = vmatprep.subr.bf16.mxu0 0
    %382 = vmatpush2.bf16.msra.mxu0 0
    %383 = vmatprep.subr.bf16.mxu0 0
    %384 = vmatpush2.bf16.msra.mxu0 0
    %385 = vmatprep.mubr.bf16.mxu0 0
    %386 = vmatmul.mubr.bf16.gmra.mxu0 %v21
    %v387 = vpop.f32.mrf.mxu0
    %v388 = vadd.f32 %v345, %v387
    %v389 = vpop.f32.mrf.mxu0
    %v390 = vadd.f32 %v347, %v389
    %v391 = vpop.f32.mrf.mxu0
    %v392 = vadd.f32 %v349, %v391
    %v393 = vpop.f32.mrf.mxu0
    %v394 = vadd.f32 %v351, %v393
    %395 = vdwg.mxu0
    %v396 = vpack.c.bf16 %v388, %v388
    %v397 = vpack.c.bf16 %v392, %v392
    %v398 = vpack.c.bf16 %v390, %v390
    %v399 = vpack.c.bf16 %v394, %v394
    %401 = vrot.lane.b32.xlu0 %v396, 64
    %v402 = vpop.permute.xlu0 %401
    %vm403 = vcmask 523264
    %v405 = vsel %vm403, %v396, 0
    %v408 = vsel %vm403, %v402, 0
    %410 = vmatprep.subr.bf16.mxu0 0
    %411 = vmatpush1.bf16.xpose.msra.mxu0 0
    %412 = vmatprep.subr.bf16.mxu0 0
    %413 = vmatpush1.bf16.xpose.msra.mxu0 0
    %414 = vmatprep.subr.bf16.mxu0 0
    %415 = vmatpush1.bf16.xpose.msra.mxu0 0
    %416 = vmatprep.subr.bf16.mxu0 0
    %417 = vmatpush1.bf16.xpose.msra.mxu0 0
    %418 = vmatprep.subr.bf16.mxu0 0
    %419 = vmatpush1.bf16.xpose.msra.mxu0 0
    %420 = vmatprep.subr.bf16.mxu0 0
    %421 = vmatpush1.bf16.xpose.msra.mxu0 0
    %422 = vmatprep.subr.bf16.mxu0 0
    %423 = vmatpush1.bf16.xpose.msra.mxu0 0
    %424 = vmatprep.subr.bf16.mxu0 0
    %425 = vmatpush1.bf16.xpose.msra.mxu0 %v408
    %426 = vmatprep.subr.bf16.mxu0 0
    %427 = vmatpush2.bf16.xpose.msra.mxu0 0
    %428 = vmatprep.subr.bf16.mxu0 0
    %429 = vmatpush2.bf16.xpose.msra.mxu0 0
    %430 = vmatprep.subr.bf16.mxu0 0
    %431 = vmatpush2.bf16.xpose.msra.mxu0 0
    %432 = vmatprep.subr.bf16.mxu0 0
    %433 = vmatpush2.bf16.xpose.msra.mxu0 0
    %434 = vmatprep.subr.bf16.mxu0 0
    %435 = vmatpush2.bf16.xpose.msra.mxu0 0
    %436 = vmatprep.subr.bf16.mxu0 0
    %437 = vmatpush2.bf16.xpose.msra.mxu0 0
    %438 = vmatprep.subr.bf16.mxu0 0
    %439 = vmatpush2.bf16.xpose.msra.mxu0 0
    %440 = vmatprep.subr.bf16.mxu0 0
    %441 = vmatpush2.bf16.xpose.msra.mxu0 0
    %442 = vmatprep.mubr.bf16.mxu0 0
    %443 = vmatmul.mubr.bf16.gmra.mxu0 %v405
    %v444 = vpop.f32.mrf.mxu0
    %v445 = vadd.f32 0.0, %v444
    %v446 = vpop.f32.mrf.mxu0
    %v447 = vpop.f32.mrf.mxu0
    %v448 = vpop.f32.mrf.mxu0
    %449 = vdwg.mxu0
    %451 = vrot.lane.b32.xlu0 %v397, 64
    %v452 = vpop.permute.xlu0 %451
    %v454 = vsel %vm403, %v397, 0
    %v457 = vsel %vm403, %v452, 0
    %459 = vmatprep.subr.bf16.mxu0 0
    %460 = vmatpush1.bf16.xpose.msra.mxu0 0
    %461 = vmatprep.subr.bf16.mxu0 0
    %462 = vmatpush1.bf16.xpose.msra.mxu0 0
    %463 = vmatprep.subr.bf16.mxu0 0
    %464 = vmatpush1.bf16.xpose.msra.mxu0 0
    %465 = vmatprep.subr.bf16.mxu0 0
    %466 = vmatpush1.bf16.xpose.msra.mxu0 0
    %467 = vmatprep.subr.bf16.mxu0 0
    %468 = vmatpush1.bf16.xpose.msra.mxu0 0
    %469 = vmatprep.subr.bf16.mxu0 0
    %470 = vmatpush1.bf16.xpose.msra.mxu0 0
    %471 = vmatprep.subr.bf16.mxu0 0
    %472 = vmatpush1.bf16.xpose.msra.mxu0 0
    %473 = vmatprep.subr.bf16.mxu0 0
    %474 = vmatpush1.bf16.xpose.msra.mxu0 %v457
    %475 = vmatprep.subr.bf16.mxu0 0
    %476 = vmatpush2.bf16.xpose.msra.mxu0 0
    %477 = vmatprep.subr.bf16.mxu0 0
    %478 = vmatpush2.bf16.xpose.msra.mxu0 0
    %479 = vmatprep.subr.bf16.mxu0 0
    %480 = vmatpush2.bf16.xpose.msra.mxu0 0
    %481 = vmatprep.subr.bf16.mxu0 0
    %482 = vmatpush2.bf16.xpose.msra.mxu0 0
    %483 = vmatprep.subr.bf16.mxu0 0
    %484 = vmatpush2.bf16.xpose.msra.mxu0 0
    %485 = vmatprep.subr.bf16.mxu0 0
    %486 = vmatpush2.bf16.xpose.msra.mxu0 0
    %487 = vmatprep.subr.bf16.mxu0 0
    %488 = vmatpush2.bf16.xpose.msra.mxu0 0
    %489 = vmatprep.subr.bf16.mxu0 0
    %490 = vmatpush2.bf16.xpose.msra.mxu0 0
    %491 = vmatprep.mubr.bf16.mxu0 0
    %492 = vmatmul.mubr.bf16.gmra.mxu0 %v454
    %v493 = vpop.f32.mrf.mxu0
    %v494 = vadd.f32 0.0, %v493
    %v495 = vpop.f32.mrf.mxu0
    %v496 = vpop.f32.mrf.mxu0
    %v497 = vpop.f32.mrf.mxu0
    %498 = vdwg.mxu0
    %v499 = vlaneseq
    %v500 = vshrl.u32 %v499, 7
    %v501 = vlaneseq
    %v502 = vand.u32 %v501, 127
    %vm503 = vcmp.le.s32.totalorder %v502, %v500
    %v504 = vsel %vm503, 1, 0
    %vm505 = vcmp.eq.s32.totalorder %v504, 1
    %v506 = vsel %vm505, %v445, -1e+30
    %v507 = vsel %vm505, %v494, -1e+30
    %vm508 = vcmask 64512
    %v509 = vsel %vm508, %v506, -inf
    %510 = vmax.xlane.f32.xlu0 %v509
    %v511 = vpop.xlane.xlu0 %510
    %v512 = vsel %vm508, %v507, -inf
    %513 = vmax.xlane.f32.xlu0 %v512
    %v514 = vpop.xlane.xlu0 %513
    %v515 = vsub.f32 %v506, %v511
    %v516 = vsub.f32 %v507, %v514
    %v517 = vmul.f32 %v515, 1.442695
    %v518 = vpow.pop %v517
    %v519 = vmul.f32 %v516, 1.442695
    %v520 = vpow.pop %v519
    %v521 = vsel %vm508, %v518, 0.0
    %522 = vadd.xlane.f32.xlu0 %v521
    %v523 = vpop.xlane.xlu0 %522
    %v524 = vsel %vm508, %v520, 0.0
    %525 = vadd.xlane.f32.xlu0 %v524
    %v526 = vpop.xlane.xlu0 %525
    %v527 = vrcp.pop %v523
    %v528 = vrcp.pop %v526
    %v529 = vmul.f32 %v518, %v527
    %v530 = vmul.f32 %v520, %v528
    %v531 = vpack.c.bf16 %v529, %v529
    %v532 = vpack.c.bf16 %v530, %v530
    %v534 = vsel %vm508, %v531, 0
    %vm536 = vcmask 1043456
    %v538 = vsel %vm536, %v398, 0
    %540 = vmatprep.subr.bf16.mxu0 0
    %541 = vmatpush1.bf16.msra.mxu0 0
    %542 = vmatprep.subr.bf16.mxu0 0
    %543 = vmatpush1.bf16.msra.mxu0 0
    %544 = vmatprep.subr.bf16.mxu0 0
    %545 = vmatpush1.bf16.msra.mxu0 0
    %546 = vmatprep.subr.bf16.mxu0 0
    %547 = vmatpush1.bf16.msra.mxu0 0
    %548 = vmatprep.subr.bf16.mxu0 0
    %549 = vmatpush1.bf16.msra.mxu0 0
    %550 = vmatprep.subr.bf16.mxu0 0
    %551 = vmatpush1.bf16.msra.mxu0 0
    %552 = vmatprep.subr.bf16.mxu0 0
    %553 = vmatpush1.bf16.msra.mxu0 0
    %554 = vmatprep.subr.bf16.mxu0 0
    %555 = vmatpush1.bf16.msra.mxu0 %v538
    %556 = vmatprep.subr.bf16.mxu0 0
    %557 = vmatpush2.bf16.msra.mxu0 0
    %558 = vmatprep.subr.bf16.mxu0 0
    %559 = vmatpush2.bf16.msra.mxu0 0
    %560 = vmatprep.subr.bf16.mxu0 0
    %561 = vmatpush2.bf16.msra.mxu0 0
    %562 = vmatprep.subr.bf16.mxu0 0
    %563 = vmatpush2.bf16.msra.mxu0 0
    %564 = vmatprep.subr.bf16.mxu0 0
    %565 = vmatpush2.bf16.msra.mxu0 0
    %566 = vmatprep.subr.bf16.mxu0 0
    %567 = vmatpush2.bf16.msra.mxu0 0
    %568 = vmatprep.subr.bf16.mxu0 0
    %569 = vmatpush2.bf16.msra.mxu0 0
    %570 = vmatprep.subr.bf16.mxu0 0
    %571 = vmatpush2.bf16.msra.mxu0 0
    %572 = vmatprep.mubr.bf16.mxu0 0
    %573 = vmatmul.mubr.bf16.gmra.mxu0 %v534
    %v574 = vpop.f32.mrf.mxu0
    %v575 = vadd.f32 0.0, %v574
    %v576 = vpop.f32.mrf.mxu0
    %v577 = vpop.f32.mrf.mxu0
    %v578 = vpop.f32.mrf.mxu0
    %579 = vdwg.mxu0
    %v581 = vsel %vm508, %v532, 0
    %v584 = vsel %vm536, %v399, 0
    %586 = vmatprep.subr.bf16.mxu0 0
    %587 = vmatpush1.bf16.msra.mxu0 0
    %588 = vmatprep.subr.bf16.mxu0 0
    %589 = vmatpush1.bf16.msra.mxu0 0
    %590 = vmatprep.subr.bf16.mxu0 0
    %591 = vmatpush1.bf16.msra.mxu0 0
    %592 = vmatprep.subr.bf16.mxu0 0
    %593 = vmatpush1.bf16.msra.mxu0 0
    %594 = vmatprep.subr.bf16.mxu0 0
    %595 = vmatpush1.bf16.msra.mxu0 0
    %596 = vmatprep.subr.bf16.mxu0 0
    %597 = vmatpush1.bf16.msra.mxu0 0
    %598 = vmatprep.subr.bf16.mxu0 0
    %599 = vmatpush1.bf16.msra.mxu0 0
    %600 = vmatprep.subr.bf16.mxu0 0
    %601 = vmatpush1.bf16.msra.mxu0 %v584
    %602 = vmatprep.subr.bf16.mxu0 0
    %603 = vmatpush2.bf16.msra.mxu0 0
    %604 = vmatprep.subr.bf16.mxu0 0
    %605 = vmatpush2.bf16.msra.mxu0 0
    %606 = vmatprep.subr.bf16.mxu0 0
    %607 = vmatpush2.bf16.msra.mxu0 0
    %608 = vmatprep.subr.bf16.mxu0 0
    %609 = vmatpush2.bf16.msra.mxu0 0
    %610 = vmatprep.subr.bf16.mxu0 0
    %611 = vmatpush2.bf16.msra.mxu0 0
    %612 = vmatprep.subr.bf16.mxu0 0
    %613 = vmatpush2.bf16.msra.mxu0 0
    %614 = vmatprep.subr.bf16.mxu0 0
    %615 = vmatpush2.bf16.msra.mxu0 0
    %616 = vmatprep.subr.bf16.mxu0 0
    %617 = vmatpush2.bf16.msra.mxu0 0
    %618 = vmatprep.mubr.bf16.mxu0 0
    %619 = vmatmul.mubr.bf16.gmra.mxu0 %v581
    %v620 = vpop.f32.mrf.mxu0
    %v621 = vadd.f32 0.0, %v620
    %v622 = vpop.f32.mrf.mxu0
    %v623 = vpop.f32.mrf.mxu0
    %v624 = vpop.f32.mrf.mxu0
    %625 = vdwg.mxu0
    %626 = vst.msk [vmem:[#allocation2] sm:$0xff] %vm403, %v575
    %627 = vst.msk [vmem:[#allocation2 + $0x8] sm:$0xff] %vm403, %v621
    // Predicated region
    $region10: #{tpu_custom_call.1} parent=1 // pred_check
      _
    $region11: #{tpu_custom_call.1} parent=1 // pred_check_branch
      %629 = sbr.rel (0) target = $region13
    $region12: #{tpu_custom_call.1} parent=1 // pred_region
      %s631 = ssub.s32 256, 256
      %632 = vsyncadd [#allocation3], %s631
      %s633 = sshll.u32 [#allocation2], 4
      %s634 = int_to_ptr.vmem [resolvable:$true] %s633
      %639 = dma.vmem_to_hbm [thread:$0]  %s634, 256, %s2, [#allocation3], 128, 128, 8
    $region13: #{tpu_custom_call.1} parent=1 // pred_fallthru
      _
    // Predicated region
    $region14: #{tpu_custom_call.1} parent=1 // pred_check
      _
    $region15: #{tpu_custom_call.1} parent=1 // pred_check_branch
      %641 = sbr.rel (0) target = $region17
    $region16: #{tpu_custom_call.1} parent=1 // pred_region
      %642 = dma.done [#allocation3], 256
    $region17: #{tpu_custom_call.1} parent=1 // pred_fallthru
      _
    %643 = vsyncpa [#allocation3], 1

</llo_original>
